<compile_context>
chip_gen: v6e
topology: v6e:2x2x1
jax: 0.10.0
libtpu: 0.0.40
codegen_flags: <defaults>
</compile_context>

<pallas_src>
import functools

import jax
import jax.numpy as jnp
from jax.experimental import pallas as pl
from jax.experimental.pallas import tpu as pltpu

HIDDEN = 64
_LANE = 128
_SUBLANE = 8


def _round_up(x, m):
    return ((x + m - 1) // m) * m


def _choose_tile(batch, requested):
    """Pick the batch tile.

    Small batches: one block covering the (8-aligned) batch.
    Large batches: 128-aligned blocks (keeps the lane-dense (1, tile) output
    block legal) capped so the grid has >= 2 steps where possible (v7x
    megacore), and by `requested` so double-buffered input tiles stay well
    inside VMEM on every generation (v7x has only 64 MiB per TC).
    """
    b8 = _round_up(batch, _SUBLANE)
    req = max(_LANE, (requested // _LANE) * _LANE)
    if b8 <= 2 * _LANE:
        return b8  # too small to split usefully; single full-batch block
    half = max(_LANE, ((b8 // 2) // _LANE) * _LANE)
    return min(req, half)


def _value_kernel(x_ref, w1_ref, b1_ref, w2_ref, b2_ref, o_ref):
    # x_ref : (TB, S)   VMEM  batch tile of states
    # w1_ref: (S, 64)   VMEM  fc1 weight, pre-transposed (in, out)
    # b1_ref: (1, 64)   VMEM
    # w2_ref: (1, 64)   VMEM  fc2 weight in torch layout (out=1, in=64)
    # b2_ref: (1, 1)    SMEM  fc2 bias scalar
    # o_ref : (1, TB)   VMEM  lane-dense row of value estimates
    x = x_ref[...]

    # fc1 + ReLU (MXU matmul, f32 accumulate).
    h = jnp.dot(x, w1_ref[...], preferred_element_type=jnp.float32) + b1_ref[...]
    h = jnp.maximum(h, 0.0)  # (TB, 64)

    # fc2: contract the hidden axis of (1, 64) against (TB, 64) -> (1, TB).
    # Producing the (1, TB) row directly keeps the output store lane-dense
    # (unmasked, full-lane stores) instead of TB/8 lane-masked (TB, 1) stores.
    v = jax.lax.dot_general(
        w2_ref[...], h,
        dimension_numbers=(((1,), (1,)), ((), ())),
        preferred_element_type=jnp.float32,
    )  # (1, TB)

    o_ref[...] = (v + b2_ref[0, 0]).astype(o_ref.dtype)


@functools.partial(jax.jit, static_argnames=("block_b",))
def value_nn_forward(state, w1, b1, w2, b2, *, block_b=1024):
    """ValueNN forward: squeeze(relu(state @ w1 + b1) @ w2.T + b2).

    state: (B, state_dim) f32
    w1:    (state_dim, 64)  fc1 weight pre-transposed to (in, out)
    b1:    (1, 64)
    w2:    (1, 64)          fc2 weight in torch layout (out, in)
    b2:    (1, 1)
    """
    B, state_dim = state.shape
    tile = _choose_tile(B, block_b)
    b_pad = _round_up(B, tile)
    if b_pad != B:
        # Pad to full blocks so the kernel never reads unspecified rows.
        state = jnp.pad(state, ((0, b_pad - B), (0, 0)))
    grid = (b_pad // tile,)

    out = pl.pallas_call(
        _value_kernel,
        out_shape=jax.ShapeDtypeStruct((1, b_pad), jnp.float32),
        grid_spec=pltpu.PrefetchScalarGridSpec(
            num_scalar_prefetch=0,
            grid=grid,
            in_specs=[
                # Batch tile of states: the only array that scales with B.
                pl.BlockSpec((tile, state_dim), lambda i: (i, 0)),
                # Grid-invariant weights/biases (constant index maps), so the
                # pipeline only DMAs them once; at these sizes extra buffering
                # is irrelevant.
                pl.BlockSpec((state_dim, HIDDEN), lambda i: (0, 0)),
                pl.BlockSpec((1, HIDDEN), lambda i: (0, 0)),
                pl.BlockSpec((1, HIDDEN), lambda i: (0, 0)),
                # fc2 bias as an SMEM scalar (no padded VMEM tile / vector load).
                pl.BlockSpec(memory_space=pltpu.MemorySpace.SMEM),
            ],
            out_specs=pl.BlockSpec((1, tile), lambda i: (0, i)),
        ),
        compiler_params=pltpu.CompilerParams(
            dimension_semantics=("parallel",),
            vmem_limit_bytes=32 * 1024 * 1024,
        ),
    )(state, w1, b1, w2, b2)

    # Lane-dense (1, b_pad) row -> (B,), then torch.squeeze semantics
    # (B == 1 collapses to a 0-d scalar, matching torch.squeeze).
    return jnp.squeeze(out[0, :B])


def init_params(key, state_dim):
    """Deterministic init mirroring nn.Linear's U(-1/sqrt(fan_in), 1/sqrt(fan_in))."""
    k1, k2, k3, k4 = jax.random.split(key, 4)
    bound1 = 1.0 / jnp.sqrt(state_dim)
    bound2 = 1.0 / jnp.sqrt(HIDDEN)
    w1 = jax.random.uniform(k1, (state_dim, HIDDEN), jnp.float32, -bound1, bound1)
    b1 = jax.random.uniform(k2, (1, HIDDEN), jnp.float32, -bound1, bound1)
    w2 = jax.random.uniform(k3, (1, HIDDEN), jnp.float32, -bound2, bound2)  # torch (out, in)
    b2 = jax.random.uniform(k4, (1, 1), jnp.float32, -bound2, bound2)
    return w1, b1, w2, b2


def _reference(state, w1, b1, w2, b2):
    return jnp.squeeze(jnp.maximum(state @ w1 + b1, 0.0) @ w2.T + b2)


if __name__ == "__main__":
    key = jax.random.PRNGKey(0)
    k_state, k_params, k_state2 = jax.random.split(key, 3)

    state_dim = 32
    w1, b1, w2, b2 = init_params(k_params, state_dim)

    # Small, single-block case.
    batch = 8
    state = jax.random.normal(k_state, (batch, state_dim), jnp.float32)
    out = jax.block_until_ready(value_nn_forward(state, w1, b1, w2, b2))
    ref = _reference(state, w1, b1, w2, b2)
    assert out.shape == (batch,), out.shape
    assert jnp.allclose(out, ref, atol=1e-5, rtol=1e-5)

    # Ragged, multi-block case (exercises padding + lane-dense tiled output).
    batch2 = 300
    state2 = jax.random.normal(k_state2, (batch2, state_dim), jnp.float32)
    out2 = jax.block_until_ready(value_nn_forward(state2, w1, b1, w2, b2))
    ref2 = _reference(state2, w1, b1, w2, b2)
    assert out2.shape == (batch2,), out2.shape
    assert jnp.allclose(out2, ref2, atol=1e-5, rtol=1e-5)

    print("KERNEL_OK")
</pallas_src>

<mosaic_0001>
module attributes {stable_mosaic.version = 11 : i64} {
  func.func @_value_kernel(%arg0: i32, %arg1: memref<8x32xf32, #tpu.memory_space<vmem>>, %arg2: memref<32x64xf32, #tpu.memory_space<vmem>>, %arg3: memref<1x64xf32, #tpu.memory_space<vmem>>, %arg4: memref<1x64xf32, #tpu.memory_space<vmem>>, %arg5: memref<1x1xf32, #tpu.memory_space<smem>>, %arg6: memref<1x8xf32, #tpu.memory_space<vmem>>) attributes {dimension_semantics = [#tpu.dimension_semantics<parallel>], iteration_bounds = array<i64: 1>, scalar_prefetch = 0 : i64, scratch_operands = 0 : i64, tpu.core_type = #tpu.core_type<tc>, window_params = [{transform_indices = @transform_0, window_bounds = array<i64: 8, 32>}, {pipeline_mode = #tpu.pipeline_mode<synchronous>, transform_indices = @transform_1, window_bounds = array<i64: 32, 64>}, {pipeline_mode = #tpu.pipeline_mode<synchronous>, transform_indices = @transform_2, window_bounds = array<i64: 1, 64>}, {pipeline_mode = #tpu.pipeline_mode<synchronous>, transform_indices = @transform_3, window_bounds = array<i64: 1, 64>}, {transform_indices = @transform_4, window_bounds = array<i64: 1, 1>}, {transform_indices = @transform_5, window_bounds = array<i64: 1, 8>}]} {
    %c0 = arith.constant 0 : index
    %c0_0 = arith.constant 0 : index
    %0 = vector.load %arg1[%c0, %c0_0] : memref<8x32xf32, #tpu.memory_space<vmem>>, vector<8x32xf32>
    %c0_1 = arith.constant 0 : index
    %c0_2 = arith.constant 0 : index
    %1 = vector.load %arg2[%c0_1, %c0_2] : memref<32x64xf32, #tpu.memory_space<vmem>>, vector<32x64xf32>
    %cst = arith.constant dense<0.000000e+00> : vector<8x64xf32>
    %2 = tpu.matmul %0, %1, %cst {dimension_numbers = #tpu.dot_dimension_numbers<[1], [0], [0], [1], [0, 0, 1, 1], [], []>} : vector<8x32xf32>, vector<32x64xf32>, vector<8x64xf32> -> vector<8x64xf32>
    %c0_3 = arith.constant 0 : index
    %c0_4 = arith.constant 0 : index
    %3 = vector.load %arg3[%c0_3, %c0_4] : memref<1x64xf32, #tpu.memory_space<vmem>>, vector<1x64xf32>
    %4 = vector.broadcast %3 : vector<1x64xf32> to vector<8x64xf32>
    %5 = arith.addf %2, %4 : vector<8x64xf32>
    %cst_5 = arith.constant 0.000000e+00 : f32
    %6 = vector.broadcast %cst_5 : f32 to vector<8x64xf32>
    %7 = arith.maximumf %5, %6 : vector<8x64xf32>
    %c0_6 = arith.constant 0 : index
    %c0_7 = arith.constant 0 : index
    %8 = vector.load %arg4[%c0_6, %c0_7] : memref<1x64xf32, #tpu.memory_space<vmem>>, vector<1x64xf32>
    %cst_8 = arith.constant dense<0.000000e+00> : vector<1x8xf32>
    %9 = tpu.matmul %8, %7, %cst_8 {dimension_numbers = #tpu.dot_dimension_numbers<[1], [1], [0], [0], [0, 0, 1, 0], [], []>} : vector<1x64xf32>, vector<8x64xf32>, vector<1x8xf32> -> vector<1x8xf32>
    %c0_9 = arith.constant 0 : index
    %c0_10 = arith.constant 0 : index
    %10 = memref.load %arg5[%c0_9, %c0_10] : memref<1x1xf32, #tpu.memory_space<smem>>
    %11 = vector.broadcast %10 : f32 to vector<1x8xf32>
    %12 = arith.addf %9, %11 : vector<1x8xf32>
    %c0_11 = arith.constant 0 : index
    %c0_12 = arith.constant 0 : index
    %13 = vector.load %arg6[%c0_11, %c0_12] : memref<1x8xf32, #tpu.memory_space<vmem>>, vector<1x8xf32>
    tpu.vector_store %arg6[%c0_11, %c0_12], %12 {strides = array<i32>} : memref<1x8xf32, #tpu.memory_space<vmem>>, vector<1x8xf32>,
    return
  }
  func.func @transform_0(%arg0: i32) -> (i32, i32) {
    %c0_i32 = arith.constant 0 : i32
    %c0_i32_0 = arith.constant 0 : i32
    return %arg0, %c0_i32 : i32, i32
  }
  func.func @transform_1(%arg0: i32) -> (i32, i32) {
    %c0_i32 = arith.constant 0 : i32
    %c0_i32_0 = arith.constant 0 : i32
    %c0_i32_1 = arith.constant 0 : i32
    return %c0_i32, %c0_i32_0 : i32, i32
  }
  func.func @transform_2(%arg0: i32) -> (i32, i32) {
    %c0_i32 = arith.constant 0 : i32
    %c0_i32_0 = arith.constant 0 : i32
    %c0_i32_1 = arith.constant 0 : i32
    return %c0_i32, %c0_i32_0 : i32, i32
  }
  func.func @transform_3(%arg0: i32) -> (i32, i32) {
    %c0_i32 = arith.constant 0 : i32
    %c0_i32_0 = arith.constant 0 : i32
    %c0_i32_1 = arith.constant 0 : i32
    return %c0_i32, %c0_i32_0 : i32, i32
  }
  func.func @transform_4(%arg0: i32) -> (i32, i32) {
    %c0_i32 = arith.constant 0 : i32
    %c0_i32_0 = arith.constant 0 : i32
    %c0_i32_1 = arith.constant 0 : i32
    return %c0_i32, %c0_i32_0 : i32, i32
  }
  func.func @transform_5(%arg0: i32) -> (i32, i32) {
    %c0_i32 = arith.constant 0 : i32
    %c0_i32_0 = arith.constant 0 : i32
    return %c0_i32, %arg0 : i32, i32
  }
}

</mosaic_0001>

<llo_original>
// kernel: value_nn_forward.1
$region0: #{value_nn_forward.1}
  #allocation0 [shape = 'u32[]', space=smem, size = 0x4, offset = 0x4, fixed_abs, tag = 'smem constant byte address 0x4 - core index']
  #allocation1 [shape = 'u32[144,128]{1,0:T(1,128)}', space=vmem, size = 0x12000, scoped, tag = 'internal scratch']
  #allocation2 [shape = 'f32[1,1]{1,0:T(1,128)S(6)}', space=smem, size = 0x200, scoped, tag = 'scoped memory for value_nn_forward.1']
  %s0 = inlined_call_operand.hbm [shape: f32[8,32], index: 0, kind: input, shape index: {}]
  %s1 = inlined_call_operand.hbm [shape: f32[32,64], index: 1, kind: input, shape index: {}]
  %s2 = inlined_call_operand.vmem [shape: f32[1,64], index: 2, kind: input, shape index: {}]
  %s3 = inlined_call_operand.vmem [shape: f32[1,64], index: 3, kind: input, shape index: {}]
  %s4 = inlined_call_operand.<no memory space> [shape: f32[1,1], index: 4, kind: input, shape index: {}]
  %s5 = inlined_call_operand.hbm [shape: f32[1,8], index: 5, kind: output, shape index: {}]
  %s6 = sld [smem:[#allocation0]]
  $region38: #{value_nn_forward.1} parent=0
    _
  %s8 = ssub.s32 1, %s6
  %s9 = scalar_select 0, %s8, %s6
  %10 = sst [smem:[#allocation2]] %s4
  $region1: #{value_nn_forward.1} parent=0
    #allocation3 [shape = 'u8[4096]{0}', space=vmem, size = 0x1000, scoped, tag = 'input window, operand 0, single buffered']
    #allocation4 [shape = 's32[1]{0}', space=sflag, size = 0x4, scoped, tag = 'scoped memory for value_nn_forward.1']
    #allocation5 [shape = 's32[1]{0}', space=sflag, size = 0x4, scoped, tag = 'scoped memory for value_nn_forward.1']
    #allocation6 [shape = 'u8[16384]{0}', space=vmem, size = 0x4000, scoped, tag = 'input window, operand 1, single buffered']
    #allocation7 [shape = 's32[1]{0}', space=sflag, size = 0x4, scoped, tag = 'scoped memory for value_nn_forward.1']
    #allocation8 [shape = 'u8[512]{0}', space=vmem, size = 0x400, scoped, tag = 'output window, operand 0, single buffered']
    %11 = vsyncpa [#allocation4], 0
    %12 = vsyncpa [#allocation7], 0
    %13 = vsyncpa [#allocation5], 0
    // Predicated region
    $region2: #{value_nn_forward.1} parent=1 // pred_check
      _
    $region3: #{value_nn_forward.1} parent=1 // pred_check_branch
      %15 = sbr.rel (0) target = $region5
    $region4: #{value_nn_forward.1} parent=1 // pred_region
      %s17 = ssub.s32 128, 128
      %18 = vsyncadd [#allocation4], %s17
      %s20 = sshll.u32 [#allocation3], 4
      %s21 = int_to_ptr.vmem [resolvable:$true] %s20
      %23 = dma.hbm_to_vmem [thread:$0]  %s0, 128, %s21, [#allocation4]
    $region5: #{value_nn_forward.1} parent=1 // pred_fallthru
      _
    // Predicated region
    $region6: #{value_nn_forward.1} parent=1 // pred_check
      _
    $region7: #{value_nn_forward.1} parent=1 // pred_check_branch
      %25 = sbr.rel (0) target = $region9
    $region8: #{value_nn_forward.1} parent=1 // pred_region
      %s27 = ssub.s32 512, 512
      %28 = vsyncadd [#allocation7], %s27
      %s29 = sshll.u32 [#allocation6], 4
      %s30 = int_to_ptr.vmem [resolvable:$true] %s29
      %35 = dma.hbm_to_vmem [thread:$0]  %s1, 512, %s30, [#allocation7], 128, 128, 8
    $region9: #{value_nn_forward.1} parent=1 // pred_fallthru
      _
    // Predicated region
    $region10: #{value_nn_forward.1} parent=1 // pred_check
      _
    $region11: #{value_nn_forward.1} parent=1 // pred_check_branch
      %37 = sbr.rel (0) target = $region13
    $region12: #{value_nn_forward.1} parent=1 // pred_region
      _
    $region13: #{value_nn_forward.1} parent=1 // pred_fallthru
      _
    // Predicated region
    $region14: #{value_nn_forward.1} parent=1 // pred_check
      _
    $region15: #{value_nn_forward.1} parent=1 // pred_check_branch
      %39 = sbr.rel (0) target = $region17
    $region16: #{value_nn_forward.1} parent=1 // pred_region
      _
    $region17: #{value_nn_forward.1} parent=1 // pred_fallthru
      _
    // Predicated region
    $region18: #{value_nn_forward.1} parent=1 // pred_check
      _
    $region19: #{value_nn_forward.1} parent=1 // pred_check_branch
      %41 = sbr.rel (0) target = $region21
    $region20: #{value_nn_forward.1} parent=1 // pred_region
      _
    $region21: #{value_nn_forward.1} parent=1 // pred_fallthru
      _
    // Predicated region
    $region22: #{value_nn_forward.1} parent=1 // pred_check
      _
    $region23: #{value_nn_forward.1} parent=1 // pred_check_branch
      %43 = sbr.rel (0) target = $region25
    $region24: #{value_nn_forward.1} parent=1 // pred_region
      %44 = dma.done [#allocation4], 128
    $region25: #{value_nn_forward.1} parent=1 // pred_fallthru
      _
    // Predicated region
    $region26: #{value_nn_forward.1} parent=1 // pred_check
      _
    $region27: #{value_nn_forward.1} parent=1 // pred_check_branch
      %46 = sbr.rel (0) target = $region29
    $region28: #{value_nn_forward.1} parent=1 // pred_region
      %47 = dma.done [#allocation7], 512
    $region29: #{value_nn_forward.1} parent=1 // pred_fallthru
      _
    %v48 = vld [vmem:[#allocation3] sm:$0xff]
    %v49 = vld [vmem:[#allocation6] sm:$0xff]
    %v50 = vld [vmem:[#allocation6 + $0x8] sm:$0xff]
    %v51 = vld [vmem:[#allocation6 + $0x10] sm:$0xff]
    %v52 = vld [vmem:[#allocation6 + $0x18] sm:$0xff]
    %v53 = vld [vmem:[%s2] sm:$0x1]
    %v55 = vlaneseq
    %v56 = vshrl.u32 %v55, 7
    %v57 = vsub.s32 0, %v56
    %v58 = vrot.slane %v53, %v57
    %vm60 = vcmask 261120
    %v62 = vsel %vm60, %v48, 0
    %64 = vmatprep.subr.mxu0 0.0
    %65 = vmatpush1.msra.mxu0 0.0
    %66 = vmatprep.subr.mxu0 0.0
    %67 = vmatpush1.msra.mxu0 0.0
    %68 = vmatprep.subr.mxu0 0.0
    %69 = vmatpush1.msra.mxu0 0.0
    %70 = vmatprep.subr.mxu0 0.0
    %71 = vmatpush1.msra.mxu0 0.0
    %72 = vmatprep.subr.mxu0 0.0
    %73 = vmatpush1.msra.mxu0 0.0
    %74 = vmatprep.subr.mxu0 0.0
    %75 = vmatpush1.msra.mxu0 0.0
    %76 = vmatprep.subr.mxu0 0.0
    %77 = vmatpush1.msra.mxu0 0.0
    %78 = vmatprep.subr.mxu0 0.0
    %79 = vmatpush1.msra.mxu0 0.0
    %80 = vmatprep.subr.mxu0 0.0
    %81 = vmatpush1.msra.mxu0 0.0
    %82 = vmatprep.subr.mxu0 0.0
    %83 = vmatpush1.msra.mxu0 0.0
    %84 = vmatprep.subr.mxu0 0.0
    %85 = vmatpush1.msra.mxu0 0.0
    %86 = vmatprep.subr.mxu0 0.0
    %87 = vmatpush1.msra.mxu0 0.0
    %88 = vmatprep.subr.mxu0 0.0
    %89 = vmatpush1.msra.mxu0 %v52
    %90 = vmatprep.subr.mxu0 0.0
    %91 = vmatpush1.msra.mxu0 %v51
    %92 = vmatprep.subr.mxu0 0.0
    %93 = vmatpush1.msra.mxu0 %v50
    %94 = vmatprep.subr.mxu0 0.0
    %95 = vmatpush1.msra.mxu0 %v49
    %96 = vmatprep.subr.mxu0 0.0
    %97 = vmatpush2.msra.mxu0 0.0
    %98 = vmatprep.subr.mxu0 0.0
    %99 = vmatpush2.msra.mxu0 0.0
    %100 = vmatprep.subr.mxu0 0.0
    %101 = vmatpush2.msra.mxu0 0.0
    %102 = vmatprep.subr.mxu0 0.0
    %103 = vmatpush2.msra.mxu0 0.0
    %104 = vmatprep.subr.mxu0 0.0
    %105 = vmatpush2.msra.mxu0 0.0
    %106 = vmatprep.subr.mxu0 0.0
    %107 = vmatpush2.msra.mxu0 0.0
    %108 = vmatprep.subr.mxu0 0.0
    %109 = vmatpush2.msra.mxu0 0.0
    %110 = vmatprep.subr.mxu0 0.0
    %111 = vmatpush2.msra.mxu0 0.0
    %112 = vmatprep.subr.mxu0 0.0
    %113 = vmatpush2.msra.mxu0 0.0
    %114 = vmatprep.subr.mxu0 0.0
    %115 = vmatpush2.msra.mxu0 0.0
    %116 = vmatprep.subr.mxu0 0.0
    %117 = vmatpush2.msra.mxu0 0.0
    %118 = vmatprep.subr.mxu0 0.0
    %119 = vmatpush2.msra.mxu0 0.0
    %120 = vmatprep.subr.mxu0 0.0
    %121 = vmatpush2.msra.mxu0 0.0
    %122 = vmatprep.subr.mxu0 0.0
    %123 = vmatpush2.msra.mxu0 0.0
    %124 = vmatprep.subr.mxu0 0.0
    %125 = vmatpush2.msra.mxu0 0.0
    %126 = vmatprep.subr.mxu0 0.0
    %127 = vmatpush2.msra.mxu0 0.0
    %128 = vmatprep.mubr.f32.mxu0 0.0
    %129 = vmatmul.mubr.f32.gmra.mxu0 %v62
    %v130 = vpop.f32.mrf.mxu0
    %v131 = vadd.f32 %v58, %v130
    %v132 = vpop.f32.mrf.mxu0
    %133 = vdwg.mxu0
    %v134 = vmax.f32 %v131, 0.0
    %v135 = vld [vmem:[%s3] sm:$0x1]
    %s136 = sld [smem:[#allocation2]]
    %v137 = vstv %s136
    %vm138 = vcmask 523264
    %v140 = vsel %vm138, %v135, 0
    %v143 = vsel %vm138, %v134, 0
    %145 = vmatprep.subr.mxu0 0.0
    %146 = vmatpush1.xpose.msra.mxu0 0.0
    %147 = vmatprep.subr.mxu0 0.0
    %148 = vmatpush1.xpose.msra.mxu0 0.0
    %149 = vmatprep.subr.mxu0 0.0
    %150 = vmatpush1.xpose.msra.mxu0 0.0
    %151 = vmatprep.subr.mxu0 0.0
    %152 = vmatpush1.xpose.msra.mxu0 0.0
    %153 = vmatprep.subr.mxu0 0.0
    %154 = vmatpush1.xpose.msra.mxu0 0.0
    %155 = vmatprep.subr.mxu0 0.0
    %156 = vmatpush1.xpose.msra.mxu0 0.0
    %157 = vmatprep.subr.mxu0 0.0
    %158 = vmatpush1.xpose.msra.mxu0 0.0
    %159 = vmatprep.subr.mxu0 0.0
    %160 = vmatpush1.xpose.msra.mxu0 0.0
    %161 = vmatprep.subr.mxu0 0.0
    %162 = vmatpush1.xpose.msra.mxu0 0.0
    %163 = vmatprep.subr.mxu0 0.0
    %164 = vmatpush1.xpose.msra.mxu0 0.0
    %165 = vmatprep.subr.mxu0 0.0
    %166 = vmatpush1.xpose.msra.mxu0 0.0
    %167 = vmatprep.subr.mxu0 0.0
    %168 = vmatpush1.xpose.msra.mxu0 0.0
    %169 = vmatprep.subr.mxu0 0.0
    %170 = vmatpush1.xpose.msra.mxu0 0.0
    %171 = vmatprep.subr.mxu0 0.0
    %172 = vmatpush1.xpose.msra.mxu0 0.0
    %173 = vmatprep.subr.mxu0 0.0
    %174 = vmatpush1.xpose.msra.mxu0 0.0
    %175 = vmatprep.subr.mxu0 0.0
    %176 = vmatpush1.xpose.msra.mxu0 %v143
    %177 = vmatprep.subr.mxu0 0.0
    %178 = vmatpush2.xpose.msra.mxu0 0.0
    %179 = vmatprep.subr.mxu0 0.0
    %180 = vmatpush2.xpose.msra.mxu0 0.0
    %181 = vmatprep.subr.mxu0 0.0
    %182 = vmatpush2.xpose.msra.mxu0 0.0
    %183 = vmatprep.subr.mxu0 0.0
    %184 = vmatpush2.xpose.msra.mxu0 0.0
    %185 = vmatprep.subr.mxu0 0.0
    %186 = vmatpush2.xpose.msra.mxu0 0.0
    %187 = vmatprep.subr.mxu0 0.0
    %188 = vmatpush2.xpose.msra.mxu0 0.0
    %189 = vmatprep.subr.mxu0 0.0
    %190 = vmatpush2.xpose.msra.mxu0 0.0
    %191 = vmatprep.subr.mxu0 0.0
    %192 = vmatpush2.xpose.msra.mxu0 0.0
    %193 = vmatprep.subr.mxu0 0.0
    %194 = vmatpush2.xpose.msra.mxu0 0.0
    %195 = vmatprep.subr.mxu0 0.0
    %196 = vmatpush2.xpose.msra.mxu0 0.0
    %197 = vmatprep.subr.mxu0 0.0
    %198 = vmatpush2.xpose.msra.mxu0 0.0
    %199 = vmatprep.subr.mxu0 0.0
    %200 = vmatpush2.xpose.msra.mxu0 0.0
    %201 = vmatprep.subr.mxu0 0.0
    %202 = vmatpush2.xpose.msra.mxu0 0.0
    %203 = vmatprep.subr.mxu0 0.0
    %204 = vmatpush2.xpose.msra.mxu0 0.0
    %205 = vmatprep.subr.mxu0 0.0
    %206 = vmatpush2.xpose.msra.mxu0 0.0
    %207 = vmatprep.subr.mxu0 0.0
    %208 = vmatpush2.xpose.msra.mxu0 0.0
    %209 = vmatprep.mubr.f32.mxu0 0.0
    %210 = vmatmul.mubr.f32.gmra.mxu0 %v140
    %v211 = vpop.f32.mrf.mxu0
    %v212 = vadd.f32 %v137, %v211
    %v213 = vpop.f32.mrf.mxu0
    %214 = vdwg.mxu0
    %vm215 = vcmask 57344
    %216 = vst.msk [vmem:[#allocation8] sm:$0x1] %vm215, %v212
    // Predicated region
    $region30: #{value_nn_forward.1} parent=1 // pred_check
      _
    $region31: #{value_nn_forward.1} parent=1 // pred_check_branch
      %218 = sbr.rel (0) target = $region33
    $region32: #{value_nn_forward.1} parent=1 // pred_region
      %s220 = ssub.s32 16, 16
      %221 = vsyncadd [#allocation5], %s220
      %s223 = sshll.u32 [#allocation8], 4
      %s224 = int_to_ptr.vmem [resolvable:$true] %s223
      %226 = dma.vmem_to_hbm [thread:$0]  %s224, 16, %s5, [#allocation5]
    $region33: #{value_nn_forward.1} parent=1 // pred_fallthru
      _
    // Predicated region
    $region34: #{value_nn_forward.1} parent=1 // pred_check
      _
    $region35: #{value_nn_forward.1} parent=1 // pred_check_branch
      %228 = sbr.rel (0) target = $region37
    $region36: #{value_nn_forward.1} parent=1 // pred_region
      %229 = dma.done [#allocation5], 16
    $region37: #{value_nn_forward.1} parent=1 // pred_fallthru
      _
    %230 = vsyncpa [#allocation4], 1
    %231 = vsyncpa [#allocation7], 1
    %232 = vsyncpa [#allocation5], 1

</llo_original>
